<compile_context>
chip_gen: v7x
topology: tpu7x:2x2x1
jax: 0.10.0
libtpu: 0.0.40
codegen_flags: <defaults>
</compile_context>

<pallas_src>
import jax
import jax.numpy as jnp
from jax import lax
from jax.experimental import pallas as pl
from jax.experimental.pallas import tpu as pltpu

KSIZE = 7
PAD = 3


def _basic_block7x7_kernel(x_ref, w1_ref, w2_ref, bn1_ref, bn2_ref,
                           fc1wt_ref, fc1b_ref, fc2w_ref, fc2b_ref, o_ref):
    # x_ref block: (1, C, L) in the original NCL layout. All compute stays in
    # (C, L) layout -> no in-kernel or wrapper transposes.
    _, C, L = x_ref.shape
    x = x_ref[0]                                            # (C, L) f32 (residual)
    lane = lax.broadcasted_iota(jnp.int32, (C, L), 1)

    def conv7(v, w_ref):
        # v: (C, L) f32. 7-tap conv along L (zero pad 3) as ONE im2col MXU matmul
        # (C, 7*C) @ (7*C, L). Shifted taps via pltpu.roll (XLU) + masked select,
        # so out-of-range taps read zeros and no padded copy is materialized.
        parts = []
        for k in range(KSIZE):
            d = k - PAD                                     # tap offset: v[:, l + d]
            if d == 0:
                parts.append(v)
            else:
                shifted = pltpu.roll(v, shift=(-d) % L, axis=1)
                valid = (lane >= -d) & (lane < L - d)
                parts.append(jnp.where(valid, shifted, jnp.zeros_like(shifted)))
        cols = jnp.concatenate(parts, axis=0).astype(jnp.bfloat16)   # (7*C, L)
        return jnp.dot(w_ref[...], cols,                    # bf16 x bf16 -> f32 acc
                       preferred_element_type=jnp.float32)  # (C, L) f32

    # conv1 -> folded BN1 (scale/shift) -> ReLU
    h = conv7(x, w1_ref)
    h = h * bn1_ref[:, 0:1] + bn1_ref[:, 1:2]
    h = jnp.maximum(h, 0.0)

    # conv2 -> folded BN2
    y = conv7(h, w2_ref)
    y = y * bn2_ref[:, 0:1] + bn2_ref[:, 1:2]

    # SE: global avg pool -> fc1 -> ReLU -> fc2 -> sigmoid (tiny; broadcast + reduce)
    s = jnp.mean(y, axis=1, keepdims=True)                                   # (C, 1)
    z = jnp.sum(fc1wt_ref[...] * s, axis=0, keepdims=True) + fc1b_ref[...]   # (1, Cr)
    z = jnp.maximum(z, 0.0)
    g = jnp.sum(fc2w_ref[...] * z, axis=1, keepdims=True) + fc2b_ref[...]    # (C, 1)
    g = jax.nn.sigmoid(g)

    # SE scale, residual add, final ReLU
    o_ref[0] = jnp.maximum(y * g + x, 0.0).astype(o_ref.dtype)


def basic_block7x7(x_ncl, params):
    """x_ncl: (N, C, L) float32 (PyTorch Conv1d layout). Returns (N, C, L)."""
    N, C_in, L = x_ncl.shape
    C = params['conv1_w'].shape[0]
    assert C_in == C, "downsample is None -> residual add needs matching channels"
    Cr = params['fc1_w'].shape[0]

    # conv weights (C_out, C_in, K) -> (C_out, K*C_in) bf16, row order matches cols
    w1 = jnp.transpose(params['conv1_w'], (0, 2, 1)).reshape(C, KSIZE * C).astype(jnp.bfloat16)
    w2 = jnp.transpose(params['conv2_w'], (0, 2, 1)).reshape(C, KSIZE * C).astype(jnp.bfloat16)

    eps = 1e-5
    s1 = params['bn1_gamma'] * lax.rsqrt(params['bn1_var'] + eps)
    bn1 = jnp.stack([s1, params['bn1_beta'] - params['bn1_mean'] * s1], axis=1)   # (C, 2)
    s2 = params['bn2_gamma'] * lax.rsqrt(params['bn2_var'] + eps)
    bn2 = jnp.stack([s2, params['bn2_beta'] - params['bn2_mean'] * s2], axis=1)   # (C, 2)

    fc1wt = jnp.transpose(params['fc1_w'][:, :, 0])          # (C, Cr)
    fc1b = params['fc1_b'][None, :]                          # (1, Cr)
    fc2w = params['fc2_w'][:, :, 0]                          # (C, Cr)
    fc2b = params['fc2_b'][:, None]                          # (C, 1)

    return pl.pallas_call(
        _basic_block7x7_kernel,
        out_shape=jax.ShapeDtypeStruct((N, C, L), x_ncl.dtype),
        grid=(N,),                                           # one sample per step
        in_specs=[
            pl.BlockSpec((1, C, L), lambda n: (n, 0, 0)),    # x, native NCL
            pl.BlockSpec((C, KSIZE * C), lambda n: (0, 0)),  # conv1 im2col weight (bf16)
            pl.BlockSpec((C, KSIZE * C), lambda n: (0, 0)),  # conv2 im2col weight (bf16)
            pl.BlockSpec((C, 2), lambda n: (0, 0)),          # bn1 scale/shift
            pl.BlockSpec((C, 2), lambda n: (0, 0)),          # bn2 scale/shift
            pl.BlockSpec((C, Cr), lambda n: (0, 0)),         # SE fc1 weight (transposed)
            pl.BlockSpec((1, Cr), lambda n: (0, 0)),         # SE fc1 bias
            pl.BlockSpec((C, Cr), lambda n: (0, 0)),         # SE fc2 weight
            pl.BlockSpec((C, 1), lambda n: (0, 0)),          # SE fc2 bias
        ],
        out_specs=pl.BlockSpec((1, C, L), lambda n: (n, 0, 0)),
        compiler_params=pltpu.CompilerParams(
            dimension_semantics=("parallel",),               # megacore on v7x
            vmem_limit_bytes=32 * 1024 * 1024),              # per-step set is tiny; safe on v7x
    )(x_ncl, w1, w2, bn1, bn2, fc1wt, fc1b, fc2w, fc2b)


def reference(x, p):
    """Pure-JAX reference of BasicBlock7x7.forward (eval-mode BN)."""
    dn = ('NCH', 'OIH', 'NCH')
    eps = 1e-5
    y = lax.conv_general_dilated(x, p['conv1_w'], (1,), [(PAD, PAD)], dimension_numbers=dn)
    s1 = p['bn1_gamma'] / jnp.sqrt(p['bn1_var'] + eps)
    y = y * s1[None, :, None] + (p['bn1_beta'] - p['bn1_mean'] * s1)[None, :, None]
    y = jnp.maximum(y, 0.0)
    y = lax.conv_general_dilated(y, p['conv2_w'], (1,), [(PAD, PAD)], dimension_numbers=dn)
    s2 = p['bn2_gamma'] / jnp.sqrt(p['bn2_var'] + eps)
    y = y * s2[None, :, None] + (p['bn2_beta'] - p['bn2_mean'] * s2)[None, :, None]
    s = jnp.mean(y, axis=2)                                                    # (N, C)
    z = jnp.maximum(jnp.einsum('nc,rc->nr', s, p['fc1_w'][:, :, 0]) + p['fc1_b'], 0.0)
    w = jax.nn.sigmoid(jnp.einsum('nr,cr->nc', z, p['fc2_w'][:, :, 0]) + p['fc2_b'])
    return jnp.maximum(y * w[:, :, None] + x, 0.0)


if __name__ == "__main__":
    key = jax.random.PRNGKey(0)
    N, C, L = 2, 32, 128          # inplanes7 == planes == 32 (> SE reduction 16), stride=1
    Cr = C // 16
    ks = jax.random.split(key, 16)
    params = {
        'conv1_w':  0.1 * jax.random.normal(ks[0], (C, C, KSIZE), jnp.float32),
        'conv2_w':  0.1 * jax.random.normal(ks[1], (C, C, KSIZE), jnp.float32),
        'bn1_gamma': 1.0 + 0.1 * jax.random.normal(ks[2], (C,), jnp.float32),
        'bn1_beta':  0.1 * jax.random.normal(ks[3], (C,), jnp.float32),
        'bn1_mean':  0.1 * jax.random.normal(ks[4], (C,), jnp.float32),
        'bn1_var':   jax.random.uniform(ks[5], (C,), jnp.float32, 0.5, 1.5),
        'bn2_gamma': 1.0 + 0.1 * jax.random.normal(ks[6], (C,), jnp.float32),
        'bn2_beta':  0.1 * jax.random.normal(ks[7], (C,), jnp.float32),
        'bn2_mean':  0.1 * jax.random.normal(ks[8], (C,), jnp.float32),
        'bn2_var':   jax.random.uniform(ks[9], (C,), jnp.float32, 0.5, 1.5),
        'fc1_w':    0.1 * jax.random.normal(ks[10], (Cr, C, 1), jnp.float32),
        'fc1_b':    0.1 * jax.random.normal(ks[11], (Cr,), jnp.float32),
        'fc2_w':    0.1 * jax.random.normal(ks[12], (C, Cr, 1), jnp.float32),
        'fc2_b':    0.1 * jax.random.normal(ks[13], (C,), jnp.float32),
    }
    x = jax.random.normal(ks[15], (N, C, L), jnp.float32)

    out = jax.block_until_ready(basic_block7x7(x, params))
    ref = jax.block_until_ready(reference(x, params))
    assert out.shape == (N, C, L)
    # bf16 MXU operands with f32 accumulation -> slightly looser tolerance than pure f32.
    assert jnp.allclose(out, ref, atol=3e-2, rtol=3e-2), "mismatch vs pure-JAX reference"
    print("KERNEL_OK")
</pallas_src>

<mosaic_0001>
module attributes {stable_mosaic.version = 11 : i64} {
  func.func @_basic_block7x7_kernel(%arg0: i32, %arg1: memref<1x32x128xf32, #tpu.memory_space<vmem>>, %arg2: memref<32x224xbf16, #tpu.memory_space<vmem>>, %arg3: memref<32x224xbf16, #tpu.memory_space<vmem>>, %arg4: memref<32x2xf32, #tpu.memory_space<vmem>>, %arg5: memref<32x2xf32, #tpu.memory_space<vmem>>, %arg6: memref<32x2xf32, #tpu.memory_space<vmem>>, %arg7: memref<1x2xf32, #tpu.memory_space<vmem>>, %arg8: memref<32x2xf32, #tpu.memory_space<vmem>>, %arg9: memref<32x1xf32, #tpu.memory_space<vmem>>, %arg10: memref<1x32x128xf32, #tpu.memory_space<vmem>>) attributes {dimension_semantics = [#tpu.dimension_semantics<parallel>], iteration_bounds = array<i64: 2>, scalar_prefetch = 0 : i64, scratch_operands = 0 : i64, tpu.core_type = #tpu.core_type<tc>, window_params = [{transform_indices = @transform_0, window_bounds = array<i64: 1, 32, 128>}, {pipeline_mode = #tpu.pipeline_mode<synchronous>, transform_indices = @transform_1, window_bounds = array<i64: 32, 224>}, {pipeline_mode = #tpu.pipeline_mode<synchronous>, transform_indices = @transform_2, window_bounds = array<i64: 32, 224>}, {pipeline_mode = #tpu.pipeline_mode<synchronous>, transform_indices = @transform_3, window_bounds = array<i64: 32, 2>}, {pipeline_mode = #tpu.pipeline_mode<synchronous>, transform_indices = @transform_4, window_bounds = array<i64: 32, 2>}, {pipeline_mode = #tpu.pipeline_mode<synchronous>, transform_indices = @transform_5, window_bounds = array<i64: 32, 2>}, {pipeline_mode = #tpu.pipeline_mode<synchronous>, transform_indices = @transform_6, window_bounds = array<i64: 1, 2>}, {pipeline_mode = #tpu.pipeline_mode<synchronous>, transform_indices = @transform_7, window_bounds = array<i64: 32, 2>}, {pipeline_mode = #tpu.pipeline_mode<synchronous>, transform_indices = @transform_8, window_bounds = array<i64: 32, 1>}, {transform_indices = @transform_9, window_bounds = array<i64: 1, 32, 128>}]} {
    %c0 = arith.constant 0 : index
    %c0_0 = arith.constant 0 : index
    %c0_1 = arith.constant 0 : index
    %0 = vector.load %arg1[%c0, %c0_0, %c0_1] : memref<1x32x128xf32, #tpu.memory_space<vmem>>, vector<1x32x128xf32>
    %1 = vector.shape_cast %0 : vector<1x32x128xf32> to vector<32x128xf32>
    %2 = tpu.iota {dimensions = array<i32: 1>} : vector<32x128xi32>
    %c3_i32 = arith.constant 3 : i32
    %3 = tpu.dynamic_rotate %1 by %c3_i32 dim 1 : vector<32x128xf32>, i32 -> vector<32x128xf32>
    %c3_i32_2 = arith.constant 3 : i32
    %4 = vector.broadcast %c3_i32_2 : i32 to vector<32x128xi32>
    %5 = arith.cmpi sge, %2, %4 : vector<32x128xi32>
    %c131_i32 = arith.constant 131 : i32
    %6 = vector.broadcast %c131_i32 : i32 to vector<32x128xi32>
    %7 = arith.cmpi slt, %2, %6 : vector<32x128xi32>
    %8 = arith.andi %5, %7 : vector<32x128xi1>
    %cst = arith.constant 0.000000e+00 : f32
    %9 = vector.broadcast %cst : f32 to vector<32x128xf32>
    %10 = arith.select %8, %3, %9 : vector<32x128xi1>, vector<32x128xf32>
    %c2_i32 = arith.constant 2 : i32
    %11 = tpu.dynamic_rotate %1 by %c2_i32 dim 1 : vector<32x128xf32>, i32 -> vector<32x128xf32>
    %c2_i32_3 = arith.constant 2 : i32
    %12 = vector.broadcast %c2_i32_3 : i32 to vector<32x128xi32>
    %13 = arith.cmpi sge, %2, %12 : vector<32x128xi32>
    %c130_i32 = arith.constant 130 : i32
    %14 = vector.broadcast %c130_i32 : i32 to vector<32x128xi32>
    %15 = arith.cmpi slt, %2, %14 : vector<32x128xi32>
    %16 = arith.andi %13, %15 : vector<32x128xi1>
    %cst_4 = arith.constant 0.000000e+00 : f32
    %17 = vector.broadcast %cst_4 : f32 to vector<32x128xf32>
    %18 = arith.select %16, %11, %17 : vector<32x128xi1>, vector<32x128xf32>
    %c1_i32 = arith.constant 1 : i32
    %19 = tpu.dynamic_rotate %1 by %c1_i32 dim 1 : vector<32x128xf32>, i32 -> vector<32x128xf32>
    %c1_i32_5 = arith.constant 1 : i32
    %20 = vector.broadcast %c1_i32_5 : i32 to vector<32x128xi32>
    %21 = arith.cmpi sge, %2, %20 : vector<32x128xi32>
    %c129_i32 = arith.constant 129 : i32
    %22 = vector.broadcast %c129_i32 : i32 to vector<32x128xi32>
    %23 = arith.cmpi slt, %2, %22 : vector<32x128xi32>
    %24 = arith.andi %21, %23 : vector<32x128xi1>
    %cst_6 = arith.constant 0.000000e+00 : f32
    %25 = vector.broadcast %cst_6 : f32 to vector<32x128xf32>
    %26 = arith.select %24, %19, %25 : vector<32x128xi1>, vector<32x128xf32>
    %c127_i32 = arith.constant 127 : i32
    %27 = tpu.dynamic_rotate %1 by %c127_i32 dim 1 : vector<32x128xf32>, i32 -> vector<32x128xf32>
    %c-1_i32 = arith.constant -1 : i32
    %28 = vector.broadcast %c-1_i32 : i32 to vector<32x128xi32>
    %29 = arith.cmpi sge, %2, %28 : vector<32x128xi32>
    %c127_i32_7 = arith.constant 127 : i32
    %30 = vector.broadcast %c127_i32_7 : i32 to vector<32x128xi32>
    %31 = arith.cmpi slt, %2, %30 : vector<32x128xi32>
    %32 = arith.andi %29, %31 : vector<32x128xi1>
    %cst_8 = arith.constant 0.000000e+00 : f32
    %33 = vector.broadcast %cst_8 : f32 to vector<32x128xf32>
    %34 = arith.select %32, %27, %33 : vector<32x128xi1>, vector<32x128xf32>
    %c126_i32 = arith.constant 126 : i32
    %35 = tpu.dynamic_rotate %1 by %c126_i32 dim 1 : vector<32x128xf32>, i32 -> vector<32x128xf32>
    %c-2_i32 = arith.constant -2 : i32
    %36 = vector.broadcast %c-2_i32 : i32 to vector<32x128xi32>
    %37 = arith.cmpi sge, %2, %36 : vector<32x128xi32>
    %c126_i32_9 = arith.constant 126 : i32
    %38 = vector.broadcast %c126_i32_9 : i32 to vector<32x128xi32>
    %39 = arith.cmpi slt, %2, %38 : vector<32x128xi32>
    %40 = arith.andi %37, %39 : vector<32x128xi1>
    %cst_10 = arith.constant 0.000000e+00 : f32
    %41 = vector.broadcast %cst_10 : f32 to vector<32x128xf32>
    %42 = arith.select %40, %35, %41 : vector<32x128xi1>, vector<32x128xf32>
    %c125_i32 = arith.constant 125 : i32
    %43 = tpu.dynamic_rotate %1 by %c125_i32 dim 1 : vector<32x128xf32>, i32 -> vector<32x128xf32>
    %c-3_i32 = arith.constant -3 : i32
    %44 = vector.broadcast %c-3_i32 : i32 to vector<32x128xi32>
    %45 = arith.cmpi sge, %2, %44 : vector<32x128xi32>
    %c125_i32_11 = arith.constant 125 : i32
    %46 = vector.broadcast %c125_i32_11 : i32 to vector<32x128xi32>
    %47 = arith.cmpi slt, %2, %46 : vector<32x128xi32>
    %48 = arith.andi %45, %47 : vector<32x128xi1>
    %cst_12 = arith.constant 0.000000e+00 : f32
    %49 = vector.broadcast %cst_12 : f32 to vector<32x128xf32>
    %50 = arith.select %48, %43, %49 : vector<32x128xi1>, vector<32x128xf32>
    %51 = tpu.concatenate %10, %18, %26, %1, %34, %42, %50 in 0 : vector<32x128xf32>, vector<32x128xf32>, vector<32x128xf32>, vector<32x128xf32>, vector<32x128xf32>, vector<32x128xf32>, vector<32x128xf32> -> vector<224x128xf32>
    %52 = arith.truncf %51 : vector<224x128xf32> to vector<224x128xbf16>
    %c0_13 = arith.constant 0 : index
    %c0_14 = arith.constant 0 : index
    %53 = vector.load %arg2[%c0_13, %c0_14] : memref<32x224xbf16, #tpu.memory_space<vmem>>, vector<32x224xbf16>
    %cst_15 = arith.constant dense<0.000000e+00> : vector<32x128xf32>
    %54 = tpu.matmul %53, %52, %cst_15 {dimension_numbers = #tpu.dot_dimension_numbers<[1], [0], [0], [1], [0, 0, 1, 1], [], []>} : vector<32x224xbf16>, vector<224x128xbf16>, vector<32x128xf32> -> vector<32x128xf32>
    %c0_16 = arith.constant 0 : index
    %c0_17 = arith.constant 0 : index
    %55 = vector.load %arg4[%c0_16, %c0_17] : memref<32x2xf32, #tpu.memory_space<vmem>>, vector<32x1xf32>
    %56 = vector.broadcast %55 : vector<32x1xf32> to vector<32x128xf32>
    %57 = arith.mulf %54, %56 : vector<32x128xf32>
    %c0_18 = arith.constant 0 : index
    %c1 = arith.constant 1 : index
    %58 = vector.load %arg4[%c0_18, %c1] : memref<32x2xf32, #tpu.memory_space<vmem>>, vector<32x1xf32>
    %59 = vector.broadcast %58 : vector<32x1xf32> to vector<32x128xf32>
    %60 = arith.addf %57, %59 : vector<32x128xf32>
    %cst_19 = arith.constant 0.000000e+00 : f32
    %61 = vector.broadcast %cst_19 : f32 to vector<32x128xf32>
    %62 = arith.maximumf %60, %61 : vector<32x128xf32>
    %c3_i32_20 = arith.constant 3 : i32
    %63 = tpu.dynamic_rotate %62 by %c3_i32_20 dim 1 : vector<32x128xf32>, i32 -> vector<32x128xf32>
    %c3_i32_21 = arith.constant 3 : i32
    %64 = vector.broadcast %c3_i32_21 : i32 to vector<32x128xi32>
    %65 = arith.cmpi sge, %2, %64 : vector<32x128xi32>
    %c131_i32_22 = arith.constant 131 : i32
    %66 = vector.broadcast %c131_i32_22 : i32 to vector<32x128xi32>
    %67 = arith.cmpi slt, %2, %66 : vector<32x128xi32>
    %68 = arith.andi %65, %67 : vector<32x128xi1>
    %cst_23 = arith.constant 0.000000e+00 : f32
    %69 = vector.broadcast %cst_23 : f32 to vector<32x128xf32>
    %70 = arith.select %68, %63, %69 : vector<32x128xi1>, vector<32x128xf32>
    %c2_i32_24 = arith.constant 2 : i32
    %71 = tpu.dynamic_rotate %62 by %c2_i32_24 dim 1 : vector<32x128xf32>, i32 -> vector<32x128xf32>
    %c2_i32_25 = arith.constant 2 : i32
    %72 = vector.broadcast %c2_i32_25 : i32 to vector<32x128xi32>
    %73 = arith.cmpi sge, %2, %72 : vector<32x128xi32>
    %c130_i32_26 = arith.constant 130 : i32
    %74 = vector.broadcast %c130_i32_26 : i32 to vector<32x128xi32>
    %75 = arith.cmpi slt, %2, %74 : vector<32x128xi32>
    %76 = arith.andi %73, %75 : vector<32x128xi1>
    %cst_27 = arith.constant 0.000000e+00 : f32
    %77 = vector.broadcast %cst_27 : f32 to vector<32x128xf32>
    %78 = arith.select %76, %71, %77 : vector<32x128xi1>, vector<32x128xf32>
    %c1_i32_28 = arith.constant 1 : i32
    %79 = tpu.dynamic_rotate %62 by %c1_i32_28 dim 1 : vector<32x128xf32>, i32 -> vector<32x128xf32>
    %c1_i32_29 = arith.constant 1 : i32
    %80 = vector.broadcast %c1_i32_29 : i32 to vector<32x128xi32>
    %81 = arith.cmpi sge, %2, %80 : vector<32x128xi32>
    %c129_i32_30 = arith.constant 129 : i32
    %82 = vector.broadcast %c129_i32_30 : i32 to vector<32x128xi32>
    %83 = arith.cmpi slt, %2, %82 : vector<32x128xi32>
    %84 = arith.andi %81, %83 : vector<32x128xi1>
    %cst_31 = arith.constant 0.000000e+00 : f32
    %85 = vector.broadcast %cst_31 : f32 to vector<32x128xf32>
    %86 = arith.select %84, %79, %85 : vector<32x128xi1>, vector<32x128xf32>
    %c127_i32_32 = arith.constant 127 : i32
    %87 = tpu.dynamic_rotate %62 by %c127_i32_32 dim 1 : vector<32x128xf32>, i32 -> vector<32x128xf32>
    %c-1_i32_33 = arith.constant -1 : i32
    %88 = vector.broadcast %c-1_i32_33 : i32 to vector<32x128xi32>
    %89 = arith.cmpi sge, %2, %88 : vector<32x128xi32>
    %c127_i32_34 = arith.constant 127 : i32
    %90 = vector.broadcast %c127_i32_34 : i32 to vector<32x128xi32>
    %91 = arith.cmpi slt, %2, %90 : vector<32x128xi32>
    %92 = arith.andi %89, %91 : vector<32x128xi1>
    %cst_35 = arith.constant 0.000000e+00 : f32
    %93 = vector.broadcast %cst_35 : f32 to vector<32x128xf32>
    %94 = arith.select %92, %87, %93 : vector<32x128xi1>, vector<32x128xf32>
    %c126_i32_36 = arith.constant 126 : i32
    %95 = tpu.dynamic_rotate %62 by %c126_i32_36 dim 1 : vector<32x128xf32>, i32 -> vector<32x128xf32>
    %c-2_i32_37 = arith.constant -2 : i32
    %96 = vector.broadcast %c-2_i32_37 : i32 to vector<32x128xi32>
    %97 = arith.cmpi sge, %2, %96 : vector<32x128xi32>
    %c126_i32_38 = arith.constant 126 : i32
    %98 = vector.broadcast %c126_i32_38 : i32 to vector<32x128xi32>
    %99 = arith.cmpi slt, %2, %98 : vector<32x128xi32>
    %100 = arith.andi %97, %99 : vector<32x128xi1>
    %cst_39 = arith.constant 0.000000e+00 : f32
    %101 = vector.broadcast %cst_39 : f32 to vector<32x128xf32>
    %102 = arith.select %100, %95, %101 : vector<32x128xi1>, vector<32x128xf32>
    %c125_i32_40 = arith.constant 125 : i32
    %103 = tpu.dynamic_rotate %62 by %c125_i32_40 dim 1 : vector<32x128xf32>, i32 -> vector<32x128xf32>
    %c-3_i32_41 = arith.constant -3 : i32
    %104 = vector.broadcast %c-3_i32_41 : i32 to vector<32x128xi32>
    %105 = arith.cmpi sge, %2, %104 : vector<32x128xi32>
    %c125_i32_42 = arith.constant 125 : i32
    %106 = vector.broadcast %c125_i32_42 : i32 to vector<32x128xi32>
    %107 = arith.cmpi slt, %2, %106 : vector<32x128xi32>
    %108 = arith.andi %105, %107 : vector<32x128xi1>
    %cst_43 = arith.constant 0.000000e+00 : f32
    %109 = vector.broadcast %cst_43 : f32 to vector<32x128xf32>
    %110 = arith.select %108, %103, %109 : vector<32x128xi1>, vector<32x128xf32>
    %111 = tpu.concatenate %70, %78, %86, %62, %94, %102, %110 in 0 : vector<32x128xf32>, vector<32x128xf32>, vector<32x128xf32>, vector<32x128xf32>, vector<32x128xf32>, vector<32x128xf32>, vector<32x128xf32> -> vector<224x128xf32>
    %112 = arith.truncf %111 : vector<224x128xf32> to vector<224x128xbf16>
    %c0_44 = arith.constant 0 : index
    %c0_45 = arith.constant 0 : index
    %113 = vector.load %arg3[%c0_44, %c0_45] : memref<32x224xbf16, #tpu.memory_space<vmem>>, vector<32x224xbf16>
    %cst_46 = arith.constant dense<0.000000e+00> : vector<32x128xf32>
    %114 = tpu.matmul %113, %112, %cst_46 {dimension_numbers = #tpu.dot_dimension_numbers<[1], [0], [0], [1], [0, 0, 1, 1], [], []>} : vector<32x224xbf16>, vector<224x128xbf16>, vector<32x128xf32> -> vector<32x128xf32>
    %c0_47 = arith.constant 0 : index
    %c0_48 = arith.constant 0 : index
    %115 = vector.load %arg5[%c0_47, %c0_48] : memref<32x2xf32, #tpu.memory_space<vmem>>, vector<32x1xf32>
    %116 = vector.broadcast %115 : vector<32x1xf32> to vector<32x128xf32>
    %117 = arith.mulf %114, %116 : vector<32x128xf32>
    %c0_49 = arith.constant 0 : index
    %c1_50 = arith.constant 1 : index
    %118 = vector.load %arg5[%c0_49, %c1_50] : memref<32x2xf32, #tpu.memory_space<vmem>>, vector<32x1xf32>
    %119 = vector.broadcast %118 : vector<32x1xf32> to vector<32x128xf32>
    %120 = arith.addf %117, %119 : vector<32x128xf32>
    %cst_51 = arith.constant dense<0.000000e+00> : vector<32xf32>
    %121 = vector.multi_reduction <add>, %120, %cst_51 [1] : vector<32x128xf32> to vector<32xf32>
    %122 = vector.shape_cast %121 : vector<32xf32> to vector<32x1xf32>
    %cst_52 = arith.constant 1.280000e+02 : f32
    %123 = vector.broadcast %cst_52 : f32 to vector<32x1xf32>
    %124 = arith.divf %122, %123 : vector<32x1xf32>
    %c0_53 = arith.constant 0 : index
    %c0_54 = arith.constant 0 : index
    %125 = vector.load %arg6[%c0_53, %c0_54] : memref<32x2xf32, #tpu.memory_space<vmem>>, vector<32x2xf32>
    %126 = vector.broadcast %124 : vector<32x1xf32> to vector<32x2xf32>
    %127 = arith.mulf %125, %126 : vector<32x2xf32>
    %cst_55 = arith.constant dense<0.000000e+00> : vector<2xf32>
    %128 = vector.multi_reduction <add>, %127, %cst_55 [0] : vector<32x2xf32> to vector<2xf32>
    %129 = vector.shape_cast %128 : vector<2xf32> to vector<1x2xf32>
    %c0_56 = arith.constant 0 : index
    %c0_57 = arith.constant 0 : index
    %130 = vector.load %arg7[%c0_56, %c0_57] : memref<1x2xf32, #tpu.memory_space<vmem>>, vector<1x2xf32>
    %131 = arith.addf %129, %130 : vector<1x2xf32>
    %cst_58 = arith.constant 0.000000e+00 : f32
    %132 = vector.broadcast %cst_58 : f32 to vector<1x2xf32>
    %133 = arith.maximumf %131, %132 : vector<1x2xf32>
    %c0_59 = arith.constant 0 : index
    %c0_60 = arith.constant 0 : index
    %134 = vector.load %arg8[%c0_59, %c0_60] : memref<32x2xf32, #tpu.memory_space<vmem>>, vector<32x2xf32>
    %135 = vector.broadcast %133 : vector<1x2xf32> to vector<32x2xf32>
    %136 = arith.mulf %134, %135 : vector<32x2xf32>
    %cst_61 = arith.constant dense<0.000000e+00> : vector<32xf32>
    %137 = vector.multi_reduction <add>, %136, %cst_61 [1] : vector<32x2xf32> to vector<32xf32>
    %138 = vector.shape_cast %137 : vector<32xf32> to vector<32x1xf32>
    %c0_62 = arith.constant 0 : index
    %c0_63 = arith.constant 0 : index
    %139 = vector.load %arg9[%c0_62, %c0_63] : memref<32x1xf32, #tpu.memory_space<vmem>>, vector<32x1xf32>
    %140 = arith.addf %138, %139 : vector<32x1xf32>
    %141 = arith.negf %140 : vector<32x1xf32>
    %142 = math.exp %141 : vector<32x1xf32>
    %cst_64 = arith.constant 1.000000e+00 : f32
    %143 = vector.broadcast %cst_64 : f32 to vector<32x1xf32>
    %144 = arith.addf %143, %142 : vector<32x1xf32>
    %145 = arith.divf %143, %144 : vector<32x1xf32>
    %146 = vector.broadcast %145 : vector<32x1xf32> to vector<32x128xf32>
    %147 = arith.mulf %120, %146 : vector<32x128xf32>
    %148 = arith.addf %147, %1 : vector<32x128xf32>
    %cst_65 = arith.constant 0.000000e+00 : f32
    %149 = vector.broadcast %cst_65 : f32 to vector<32x128xf32>
    %150 = arith.maximumf %148, %149 : vector<32x128xf32>
    %c0_66 = arith.constant 0 : index
    %c0_67 = arith.constant 0 : index
    %c0_68 = arith.constant 0 : index
    %151 = vector.load %arg10[%c0_66, %c0_67, %c0_68] : memref<1x32x128xf32, #tpu.memory_space<vmem>>, vector<1x32x128xf32>
    %152 = vector.shape_cast %151 : vector<1x32x128xf32> to vector<32x128xf32>
    %153 = vector.shape_cast %150 : vector<32x128xf32> to vector<1x32x128xf32>
    tpu.vector_store %arg10[%c0_66, %c0_67, %c0_68], %153 {strides = array<i32>} : memref<1x32x128xf32, #tpu.memory_space<vmem>>, vector<1x32x128xf32>,
    return
  }
  func.func @transform_0(%arg0: i32) -> (i32, i32, i32) {
    %c0_i32 = arith.constant 0 : i32
    %c0_i32_0 = arith.constant 0 : i32
    %c0_i32_1 = arith.constant 0 : i32
    return %arg0, %c0_i32, %c0_i32_0 : i32, i32, i32
  }
  func.func @transform_1(%arg0: i32) -> (i32, i32) {
    %c0_i32 = arith.constant 0 : i32
    %c0_i32_0 = arith.constant 0 : i32
    %c0_i32_1 = arith.constant 0 : i32
    return %c0_i32, %c0_i32_0 : i32, i32
  }
  func.func @transform_2(%arg0: i32) -> (i32, i32) {
    %c0_i32 = arith.constant 0 : i32
    %c0_i32_0 = arith.constant 0 : i32
    %c0_i32_1 = arith.constant 0 : i32
    return %c0_i32, %c0_i32_0 : i32, i32
  }
  func.func @transform_3(%arg0: i32) -> (i32, i32) {
    %c0_i32 = arith.constant 0 : i32
    %c0_i32_0 = arith.constant 0 : i32
    %c0_i32_1 = arith.constant 0 : i32
    return %c0_i32, %c0_i32_0 : i32, i32
  }
  func.func @transform_4(%arg0: i32) -> (i32, i32) {
    %c0_i32 = arith.constant 0 : i32
    %c0_i32_0 = arith.constant 0 : i32
    %c0_i32_1 = arith.constant 0 : i32
    return %c0_i32, %c0_i32_0 : i32, i32
  }
  func.func @transform_5(%arg0: i32) -> (i32, i32) {
    %c0_i32 = arith.constant 0 : i32
    %c0_i32_0 = arith.constant 0 : i32
    %c0_i32_1 = arith.constant 0 : i32
    return %c0_i32, %c0_i32_0 : i32, i32
  }
  func.func @transform_6(%arg0: i32) -> (i32, i32) {
    %c0_i32 = arith.constant 0 : i32
    %c0_i32_0 = arith.constant 0 : i32
    %c0_i32_1 = arith.constant 0 : i32
    return %c0_i32, %c0_i32_0 : i32, i32
  }
  func.func @transform_7(%arg0: i32) -> (i32, i32) {
    %c0_i32 = arith.constant 0 : i32
    %c0_i32_0 = arith.constant 0 : i32
    %c0_i32_1 = arith.constant 0 : i32
    return %c0_i32, %c0_i32_0 : i32, i32
  }
  func.func @transform_8(%arg0: i32) -> (i32, i32) {
    %c0_i32 = arith.constant 0 : i32
    %c0_i32_0 = arith.constant 0 : i32
    %c0_i32_1 = arith.constant 0 : i32
    return %c0_i32, %c0_i32_0 : i32, i32
  }
  func.func @transform_9(%arg0: i32) -> (i32, i32, i32) {
    %c0_i32 = arith.constant 0 : i32
    %c0_i32_0 = arith.constant 0 : i32
    %c0_i32_1 = arith.constant 0 : i32
    return %arg0, %c0_i32, %c0_i32_0 : i32, i32, i32
  }
}

</mosaic_0001>

<llo_original>
// kernel: tpu_custom_call.1
$region0: #{tpu_custom_call.1}
  #allocation0 [shape = 'u32[]', space=smem, size = 0x4, offset = 0x4, fixed_abs, tag = 'smem constant byte address 0x4 - core index']
  #allocation1 [shape = 'u32[144,128]{1,0:T(1,128)}', space=vmem, size = 0x12000, scoped, tag = 'internal scratch']
  %s0 = inlined_call_operand.vmem [shape: f32[2,32,128], index: 0, kind: input, shape index: {}]
  %s1 = inlined_call_operand.vmem [shape: bf16[32,224], index: 1, kind: input, shape index: {}]
  %s2 = inlined_call_operand.vmem [shape: bf16[32,224], index: 2, kind: input, shape index: {}]
  %s3 = inlined_call_operand.vmem [shape: f32[32,2], index: 3, kind: input, shape index: {}]
  %s4 = inlined_call_operand.vmem [shape: f32[32,2], index: 4, kind: input, shape index: {}]
  %s5 = inlined_call_operand.vmem [shape: f32[32,2], index: 5, kind: input, shape index: {}]
  %s6 = inlined_call_operand.vmem [shape: f32[1,2], index: 6, kind: input, shape index: {}]
  %s7 = inlined_call_operand.vmem [shape: f32[32,2], index: 7, kind: input, shape index: {}]
  %s8 = inlined_call_operand.vmem [shape: f32[32,1], index: 8, kind: input, shape index: {}]
  %s9 = inlined_call_operand.hbm [shape: f32[2,32,128], index: 9, kind: output, shape index: {}]
  %s10 = sld [smem:[#allocation0]]
  $region69: #{tpu_custom_call.1} parent=0
    _
  %s12 = ssub.s32 1, %s10
  %s13 = scalar_select 0, %s12, %s10
  $region1: #{tpu_custom_call.1} parent=0
    #allocation2 [shape = 'u8[32768]{0}', space=vmem, size = 0x8000, scoped, tag = 'output window, operand 0']
    #allocation3 [shape = 's32[2]{0}', space=sflag, size = 0x8, scoped, tag = 'scoped memory for tpu_custom_call.1']
    %14 = vsyncpa [#allocation3], 0
    %s15 = scalar_lea.sflag [#allocation3], 1
    %16 = vsyncpa %s15, 0
    loop: start=0, step=1, limit=4
    $region2: #{tpu_custom_call.1} parent=1 // loop_pre_header
      _
    $region3: #{tpu_custom_call.1} parent=1 // loop_header
      %s18 = sphi 0, %s22
      %p19 = scmp.ge.s32.totalorder %s18, 4
      %s28 = sphi 0, %s30
      %s31 = sphi 0, %s28
      %s32 = sphi 0, %s31
      %s48 = sphi 0, %s32
      %s52 = sphi 0, %s52
      %s54 = sphi 0, %s52
      %s55 = sphi 0, %s54
      %s69 = sphi 0, %s55
      %s73 = sphi 0, %s73
      %s75 = sphi 0, %s73
      %s76 = sphi 0, %s75
      %s90 = sphi 0, %s76
      %s94 = sphi 0, %s94
      %s96 = sphi 0, %s94
      %s97 = sphi 0, %s96
      %s111 = sphi 0, %s97
      %s115 = sphi 0, %s115
      %s117 = sphi 0, %s115
      %s118 = sphi 0, %s117
      %s132 = sphi 0, %s118
      %s136 = sphi 0, %s136
      %s138 = sphi 0, %s136
      %s139 = sphi 0, %s138
      %s153 = sphi 0, %s139
      %s157 = sphi 0, %s157
      %s159 = sphi 0, %s157
      %s160 = sphi 0, %s159
      %s174 = sphi 0, %s160
      %s178 = sphi 0, %s178
      %s180 = sphi 0, %s178
      %s181 = sphi 0, %s180
      %s195 = sphi 0, %s181
      %s199 = sphi 0, %s199
      %s201 = sphi 0, %s199
      %s202 = sphi 0, %s201
      %s216 = sphi 0, %s202
      %s222 = sphi 0, %s224
      %s225 = sphi 0, %s222
      %s226 = sphi 0, %s225
      %s242 = sphi 0, %s226
    $region4: #{tpu_custom_call.1} parent=1 // loop_header_branch
      %21 = sbr.rel (%p19) target = $region8
    $region5: #{tpu_custom_call.1} parent=1 // loop_body
      %s23 = ssub.s32 %s18, 1
      %s24 = ssub.s32 %s18, 2
      %s25 = sadd.s32 %s18, 1
      %s26 = ssub.s32 %s18, %s25
      %p27 = scmp.eq.s32.totalorder %s26, 0
      %s29 = sadd.s32 %s28, 1
      %s30 = scalar_select %p27, %s28, %s29
      %p33 = pneg %p27
      %p34 = scmp.eq.s32.totalorder %s18, 1
      %p35 = por %p33, %p34
      %p36 = scmp.ne.s32.totalorder %s28, %s31
      %p37 = scmp.eq.s32.totalorder %s18, 0
      %p38 = por %p36, %p37
      %p39 = scmp.ne.s32.totalorder %s28, %s31
      %p40 = scmp.eq.s32.totalorder %s23, 1
      %p41 = por %p39, %p40
      %p42 = scmp.ne.s32.totalorder %s31, %s32
      %p43 = scmp.eq.s32.totalorder %s23, 0
      %p44 = por %p42, %p43
      %p45 = scmp.ne.s32.totalorder %s31, %s32
      %p46 = scmp.eq.s32.totalorder %s24, 1
      %p47 = por %p45, %p46
      %p49 = scmp.ne.s32.totalorder %s32, %s48
      %p50 = scmp.eq.s32.totalorder %s24, 0
      %p51 = por %p49, %p50
      %s53 = sadd.s32 %s52, 1
      %p56 = scmp.eq.s32.totalorder %s18, 1
      %p57 = scmp.ne.s32.totalorder %s52, %s54
      %p58 = scmp.eq.s32.totalorder %s18, 0
      %p59 = por %p57, %p58
      %p60 = scmp.ne.s32.totalorder %s52, %s54
      %p61 = scmp.eq.s32.totalorder %s23, 1
      %p62 = por %p60, %p61
      %p63 = scmp.ne.s32.totalorder %s54, %s55
      %p64 = scmp.eq.s32.totalorder %s23, 0
      %p65 = por %p63, %p64
      %p66 = scmp.ne.s32.totalorder %s54, %s55
      %p67 = scmp.eq.s32.totalorder %s24, 1
      %p68 = por %p66, %p67
      %p70 = scmp.ne.s32.totalorder %s55, %s69
      %p71 = scmp.eq.s32.totalorder %s24, 0
      %p72 = por %p70, %p71
      %s74 = sadd.s32 %s73, 1
      %p77 = scmp.eq.s32.totalorder %s18, 1
      %p78 = scmp.ne.s32.totalorder %s73, %s75
      %p79 = scmp.eq.s32.totalorder %s18, 0
      %p80 = por %p78, %p79
      %p81 = scmp.ne.s32.totalorder %s73, %s75
      %p82 = scmp.eq.s32.totalorder %s23, 1
      %p83 = por %p81, %p82
      %p84 = scmp.ne.s32.totalorder %s75, %s76
      %p85 = scmp.eq.s32.totalorder %s23, 0
      %p86 = por %p84, %p85
      %p87 = scmp.ne.s32.totalorder %s75, %s76
      %p88 = scmp.eq.s32.totalorder %s24, 1
      %p89 = por %p87, %p88
      %p91 = scmp.ne.s32.totalorder %s76, %s90
      %p92 = scmp.eq.s32.totalorder %s24, 0
      %p93 = por %p91, %p92
      %s95 = sadd.s32 %s94, 1
      %p98 = scmp.eq.s32.totalorder %s18, 1
      %p99 = scmp.ne.s32.totalorder %s94, %s96
      %p100 = scmp.eq.s32.totalorder %s18, 0
      %p101 = por %p99, %p100
      %p102 = scmp.ne.s32.totalorder %s94, %s96
      %p103 = scmp.eq.s32.totalorder %s23, 1
      %p104 = por %p102, %p103
      %p105 = scmp.ne.s32.totalorder %s96, %s97
      %p106 = scmp.eq.s32.totalorder %s23, 0
      %p107 = por %p105, %p106
      %p108 = scmp.ne.s32.totalorder %s96, %s97
      %p109 = scmp.eq.s32.totalorder %s24, 1
      %p110 = por %p108, %p109
      %p112 = scmp.ne.s32.totalorder %s97, %s111
      %p113 = scmp.eq.s32.totalorder %s24, 0
      %p114 = por %p112, %p113
      %s116 = sadd.s32 %s115, 1
      %p119 = scmp.eq.s32.totalorder %s18, 1
      %p120 = scmp.ne.s32.totalorder %s115, %s117
      %p121 = scmp.eq.s32.totalorder %s18, 0
      %p122 = por %p120, %p121
      %p123 = scmp.ne.s32.totalorder %s115, %s117
      %p124 = scmp.eq.s32.totalorder %s23, 1
      %p125 = por %p123, %p124
      %p126 = scmp.ne.s32.totalorder %s117, %s118
      %p127 = scmp.eq.s32.totalorder %s23, 0
      %p128 = por %p126, %p127
      %p129 = scmp.ne.s32.totalorder %s117, %s118
      %p130 = scmp.eq.s32.totalorder %s24, 1
      %p131 = por %p129, %p130
      %p133 = scmp.ne.s32.totalorder %s118, %s132
      %p134 = scmp.eq.s32.totalorder %s24, 0
      %p135 = por %p133, %p134
      %s137 = sadd.s32 %s136, 1
      %p140 = scmp.eq.s32.totalorder %s18, 1
      %p141 = scmp.ne.s32.totalorder %s136, %s138
      %p142 = scmp.eq.s32.totalorder %s18, 0
      %p143 = por %p141, %p142
      %p144 = scmp.ne.s32.totalorder %s136, %s138
      %p145 = scmp.eq.s32.totalorder %s23, 1
      %p146 = por %p144, %p145
      %p147 = scmp.ne.s32.totalorder %s138, %s139
      %p148 = scmp.eq.s32.totalorder %s23, 0
      %p149 = por %p147, %p148
      %p150 = scmp.ne.s32.totalorder %s138, %s139
      %p151 = scmp.eq.s32.totalorder %s24, 1
      %p152 = por %p150, %p151
      %p154 = scmp.ne.s32.totalorder %s139, %s153
      %p155 = scmp.eq.s32.totalorder %s24, 0
      %p156 = por %p154, %p155
      %s158 = sadd.s32 %s157, 1
      %p161 = scmp.eq.s32.totalorder %s18, 1
      %p162 = scmp.ne.s32.totalorder %s157, %s159
      %p163 = scmp.eq.s32.totalorder %s18, 0
      %p164 = por %p162, %p163
      %p165 = scmp.ne.s32.totalorder %s157, %s159
      %p166 = scmp.eq.s32.totalorder %s23, 1
      %p167 = por %p165, %p166
      %p168 = scmp.ne.s32.totalorder %s159, %s160
      %p169 = scmp.eq.s32.totalorder %s23, 0
      %p170 = por %p168, %p169
      %p171 = scmp.ne.s32.totalorder %s159, %s160
      %p172 = scmp.eq.s32.totalorder %s24, 1
      %p173 = por %p171, %p172
      %p175 = scmp.ne.s32.totalorder %s160, %s174
      %p176 = scmp.eq.s32.totalorder %s24, 0
      %p177 = por %p175, %p176
      %s179 = sadd.s32 %s178, 1
      %p182 = scmp.eq.s32.totalorder %s18, 1
      %p183 = scmp.ne.s32.totalorder %s178, %s180
      %p184 = scmp.eq.s32.totalorder %s18, 0
      %p185 = por %p183, %p184
      %p186 = scmp.ne.s32.totalorder %s178, %s180
      %p187 = scmp.eq.s32.totalorder %s23, 1
      %p188 = por %p186, %p187
      %p189 = scmp.ne.s32.totalorder %s180, %s181
      %p190 = scmp.eq.s32.totalorder %s23, 0
      %p191 = por %p189, %p190
      %p192 = scmp.ne.s32.totalorder %s180, %s181
      %p193 = scmp.eq.s32.totalorder %s24, 1
      %p194 = por %p192, %p193
      %p196 = scmp.ne.s32.totalorder %s181, %s195
      %p197 = scmp.eq.s32.totalorder %s24, 0
      %p198 = por %p196, %p197
      %s200 = sadd.s32 %s199, 1
      %p203 = scmp.eq.s32.totalorder %s18, 1
      %p204 = scmp.ne.s32.totalorder %s199, %s201
      %p205 = scmp.eq.s32.totalorder %s18, 0
      %p206 = por %p204, %p205
      %p207 = scmp.ne.s32.totalorder %s199, %s201
      %p208 = scmp.eq.s32.totalorder %s23, 1
      %p209 = por %p207, %p208
      %p210 = scmp.ne.s32.totalorder %s201, %s202
      %p211 = scmp.eq.s32.totalorder %s23, 0
      %p212 = por %p210, %p211
      %p213 = scmp.ne.s32.totalorder %s201, %s202
      %p214 = scmp.eq.s32.totalorder %s24, 1
      %p215 = por %p213, %p214
      %p217 = scmp.ne.s32.totalorder %s202, %s216
      %p218 = scmp.eq.s32.totalorder %s24, 0
      %p219 = por %p217, %p218
      %s220 = ssub.s32 %s18, %s25
      %p221 = scmp.eq.s32.totalorder %s220, 0
      %s223 = sadd.s32 %s222, 1
      %s224 = scalar_select %p221, %s222, %s223
      %p227 = pneg %p221
      %p228 = scmp.eq.s32.totalorder %s18, 1
      %p229 = por %p227, %p228
      %p230 = scmp.ne.s32.totalorder %s222, %s225
      %p231 = scmp.eq.s32.totalorder %s18, 0
      %p232 = por %p230, %p231
      %p233 = scmp.ne.s32.totalorder %s222, %s225
      %p234 = scmp.eq.s32.totalorder %s23, 1
      %p235 = por %p233, %p234
      %p236 = scmp.ne.s32.totalorder %s225, %s226
      %p237 = scmp.eq.s32.totalorder %s23, 0
      %p238 = por %p236, %p237
      %p239 = scmp.ne.s32.totalorder %s225, %s226
      %p240 = scmp.eq.s32.totalorder %s24, 1
      %p241 = por %p239, %p240
      %p243 = scmp.ne.s32.totalorder %s226, %s242
      %p244 = scmp.eq.s32.totalorder %s24, 0
      %p245 = por %p243, %p244
      %p246 = scmp.le.s32.totalorder 1, %s18
      %p247 = scmp.lt.s32.totalorder %s18, 3
      %p248 = pnand %p246, %p247
      %p249 = pneg %p248
      // Predicated region
      $region9: #{tpu_custom_call.1} parent=5 // pred_check
        _
      $region10: #{tpu_custom_call.1} parent=5 // pred_check_branch
        %251 = sbr.rel (%p248) target = $region12
      $region11: #{tpu_custom_call.1} parent=5 // pred_region
        %s252 = ssub.s32 %s18, 1
        // Predicated region
        $region13: #{tpu_custom_call.1} parent=11 // pred_check
          %p253 = pneg %p65
        $region14: #{tpu_custom_call.1} parent=11 // pred_check_branch
          %255 = sbr.rel (%p253) target = $region16
        $region15: #{tpu_custom_call.1} parent=11 // pred_region
          _
        $region16: #{tpu_custom_call.1} parent=11 // pred_fallthru
          _
        // Predicated region
        $region17: #{tpu_custom_call.1} parent=11 // pred_check
          %p256 = pneg %p86
        $region18: #{tpu_custom_call.1} parent=11 // pred_check_branch
          %258 = sbr.rel (%p256) target = $region20
        $region19: #{tpu_custom_call.1} parent=11 // pred_region
          _
        $region20: #{tpu_custom_call.1} parent=11 // pred_fallthru
          _
        // Predicated region
        $region21: #{tpu_custom_call.1} parent=11 // pred_check
          %p259 = pneg %p107
        $region22: #{tpu_custom_call.1} parent=11 // pred_check_branch
          %261 = sbr.rel (%p259) target = $region24
        $region23: #{tpu_custom_call.1} parent=11 // pred_region
          _
        $region24: #{tpu_custom_call.1} parent=11 // pred_fallthru
          _
        // Predicated region
        $region25: #{tpu_custom_call.1} parent=11 // pred_check
          %p262 = pneg %p128
        $region26: #{tpu_custom_call.1} parent=11 // pred_check_branch
          %264 = sbr.rel (%p262) target = $region28
        $region27: #{tpu_custom_call.1} parent=11 // pred_region
          _
        $region28: #{tpu_custom_call.1} parent=11 // pred_fallthru
          _
        // Predicated region
        $region29: #{tpu_custom_call.1} parent=11 // pred_check
          %p265 = pneg %p149
        $region30: #{tpu_custom_call.1} parent=11 // pred_check_branch
          %267 = sbr.rel (%p265) target = $region32
        $region31: #{tpu_custom_call.1} parent=11 // pred_region
          _
        $region32: #{tpu_custom_call.1} parent=11 // pred_fallthru
          _
        // Predicated region
        $region33: #{tpu_custom_call.1} parent=11 // pred_check
          %p268 = pneg %p170
        $region34: #{tpu_custom_call.1} parent=11 // pred_check_branch
          %270 = sbr.rel (%p268) target = $region36
        $region35: #{tpu_custom_call.1} parent=11 // pred_region
          _
        $region36: #{tpu_custom_call.1} parent=11 // pred_fallthru
          _
        // Predicated region
        $region37: #{tpu_custom_call.1} parent=11 // pred_check
          %p271 = pneg %p191
        $region38: #{tpu_custom_call.1} parent=11 // pred_check_branch
          %273 = sbr.rel (%p271) target = $region40
        $region39: #{tpu_custom_call.1} parent=11 // pred_region
          _
        $region40: #{tpu_custom_call.1} parent=11 // pred_fallthru
          _
        // Predicated region
        $region41: #{tpu_custom_call.1} parent=11 // pred_check
          %p274 = pneg %p212
        $region42: #{tpu_custom_call.1} parent=11 // pred_check_branch
          %276 = sbr.rel (%p274) target = $region44
        $region43: #{tpu_custom_call.1} parent=11 // pred_region
          _
        $region44: #{tpu_custom_call.1} parent=11 // pred_fallthru
          _
      $region12: #{tpu_custom_call.1} parent=5 // pred_fallthru
        _
      %p277 = scmp.lt.s32.totalorder %s18, 2
      // Predicated region
      $region45: #{tpu_custom_call.1} parent=5 // pred_check
        %p278 = pneg %p277
      $region46: #{tpu_custom_call.1} parent=5 // pred_check_branch
        %280 = sbr.rel (%p278) target = $region48
      $region47: #{tpu_custom_call.1} parent=5 // pred_region
        // Predicated region
        $region49: #{tpu_custom_call.1} parent=47 // pred_check
          %p281 = pneg %p38
        $region50: #{tpu_custom_call.1} parent=47 // pred_check_branch
          %283 = sbr.rel (%p281) target = $region52
        $region51: #{tpu_custom_call.1} parent=47 // pred_region
          %p284 = scmp.lt.s32.totalorder %s18, 1
          %s285 = scalar_select %p284, %s18, 1
          %s286 = smul.addr %s285, 4
          %s287 = smul.addr %s286, 8
          %s288 = scalar_lea.vmem %s0, %s287
        $region52: #{tpu_custom_call.1} parent=47 // pred_fallthru
          _
      $region48: #{tpu_custom_call.1} parent=5 // pred_fallthru
        _
      %p289 = scmp.le.s32.totalorder 1, %s18
      %p290 = scmp.lt.s32.totalorder %s18, 3
      %p291 = pnand %p289, %p290
      %p292 = pneg %p291
      // Predicated region
      $region53: #{tpu_custom_call.1} parent=5 // pred_check
        _
      $region54: #{tpu_custom_call.1} parent=5 // pred_check_branch
        %294 = sbr.rel (%p291) target = $region56
      $region55: #{tpu_custom_call.1} parent=5 // pred_region
        %s295 = ssub.s32 %s18, 1
        %p296 = scmp.lt.s32.totalorder %s23, 1
        %s297 = scalar_select %p296, %s23, 1
        %s298 = smul.addr %s297, 4
        %s299 = smul.addr %s298, 8
        %s300 = scalar_lea.vmem %s0, %s299
        %p301 = pneg %p44
        %p302 = pneg %p41
        %p303 = pneg %p65
        %p304 = pneg %p62
        %p305 = pneg %p86
        %p306 = pneg %p83
        %p307 = pneg %p107
        %p308 = pneg %p104
        %p309 = pneg %p128
        %p310 = pneg %p125
        %p311 = pneg %p149
        %p312 = pneg %p146
        %p313 = pneg %p170
        %p314 = pneg %p167
        %p315 = pneg %p191
        %p316 = pneg %p188
        %p317 = pneg %p212
        %p318 = pneg %p209
        %p319 = pneg %p238
        %p320 = pneg %p235
        %s321 = sand.u32 %s225, 1
        %s322 = scalar_lea.sflag [#allocation3], %s321
        %s323 = sand.u32 %s225, 1
        %s324 = smul.addr %s323, 32
        %s325 = scalar_lea.vmem [#allocation2], %s324
        %p326 = scmp.lt.s32.totalorder %s23, 1
        %s327 = scalar_select %p326, %s23, 1
        %s328 = smul.addr %s327, 4
        %s329 = smul.addr %s328, 8
        %s330 = scalar_lea.vmem %s0, %s329
        %v332 = vld [vmem:[%s330] sm:$0xff]
        %v333 = vld [vmem:[%s330 + $0x8] sm:$0xff]
        %v334 = vld [vmem:[%s330 + $0x10] sm:$0xff]
        %v335 = vld [vmem:[%s330 + $0x18] sm:$0xff]
        %v336 = vlaneseq
        %v337 = vand.u32 %v336, 127
        %338 = vrot.lane.b32.xlu0 %v332, 3
        %v339 = vpop.permute.xlu0 %338
        %340 = vrot.lane.b32.xlu0 %v333, 3
        %v341 = vpop.permute.xlu0 %340
        %342 = vrot.lane.b32.xlu0 %v334, 3
        %v343 = vpop.permute.xlu0 %342
        %344 = vrot.lane.b32.xlu0 %v335, 3
        %v345 = vpop.permute.xlu0 %344
        %vm346 = vcmp.ge.s32.totalorder %v337, 3
        %vm347 = vcmp.lt.s32.totalorder %v337, 131
        %vm348 = vmand %vm346, %vm347
        %v349 = vsel %vm348, %v339, 0.0
        %v350 = vsel %vm348, %v341, 0.0
        %v351 = vsel %vm348, %v343, 0.0
        %v352 = vsel %vm348, %v345, 0.0
        %353 = vrot.lane.b32.xlu0 %v332, 2
        %v354 = vpop.permute.xlu0 %353
        %355 = vrot.lane.b32.xlu0 %v333, 2
        %v356 = vpop.permute.xlu0 %355
        %357 = vrot.lane.b32.xlu0 %v334, 2
        %v358 = vpop.permute.xlu0 %357
        %359 = vrot.lane.b32.xlu0 %v335, 2
        %v360 = vpop.permute.xlu0 %359
        %vm361 = vcmp.ge.s32.totalorder %v337, 2
        %vm362 = vcmp.lt.s32.totalorder %v337, 130
        %vm363 = vmand %vm361, %vm362
        %v364 = vsel %vm363, %v354, 0.0
        %v365 = vsel %vm363, %v356, 0.0
        %v366 = vsel %vm363, %v358, 0.0
        %v367 = vsel %vm363, %v360, 0.0
        %368 = vrot.lane.b32.xlu0 %v332, 1
        %v369 = vpop.permute.xlu0 %368
        %370 = vrot.lane.b32.xlu0 %v333, 1
        %v371 = vpop.permute.xlu0 %370
        %372 = vrot.lane.b32.xlu0 %v334, 1
        %v373 = vpop.permute.xlu0 %372
        %374 = vrot.lane.b32.xlu0 %v335, 1
        %v375 = vpop.permute.xlu0 %374
        %vm376 = vcmp.ge.s32.totalorder %v337, 1
        %vm377 = vcmp.lt.s32.totalorder %v337, 129
        %vm378 = vmand %vm376, %vm377
        %v379 = vsel %vm378, %v369, 0.0
        %v380 = vsel %vm378, %v371, 0.0
        %v381 = vsel %vm378, %v373, 0.0
        %v382 = vsel %vm378, %v375, 0.0
        %383 = vrot.lane.b32.xlu0 %v332, 127
        %v384 = vpop.permute.xlu0 %383
        %385 = vrot.lane.b32.xlu0 %v333, 127
        %v386 = vpop.permute.xlu0 %385
        %387 = vrot.lane.b32.xlu0 %v334, 127
        %v388 = vpop.permute.xlu0 %387
        %389 = vrot.lane.b32.xlu0 %v335, 127
        %v390 = vpop.permute.xlu0 %389
        %vm391 = vcmp.ge.s32.totalorder %v337, 4294967295
        %vm392 = vcmp.lt.s32.totalorder %v337, 127
        %vm393 = vmand %vm391, %vm392
        %v394 = vsel %vm393, %v384, 0.0
        %v395 = vsel %vm393, %v386, 0.0
        %v396 = vsel %vm393, %v388, 0.0
        %v397 = vsel %vm393, %v390, 0.0
        %398 = vrot.lane.b32.xlu0 %v332, 126
        %v399 = vpop.permute.xlu0 %398
        %400 = vrot.lane.b32.xlu0 %v333, 126
        %v401 = vpop.permute.xlu0 %400
        %402 = vrot.lane.b32.xlu0 %v334, 126
        %v403 = vpop.permute.xlu0 %402
        %404 = vrot.lane.b32.xlu0 %v335, 126
        %v405 = vpop.permute.xlu0 %404
        %vm406 = vcmp.ge.s32.totalorder %v337, 4294967294
        %vm407 = vcmp.lt.s32.totalorder %v337, 126
        %vm408 = vmand %vm406, %vm407
        %v409 = vsel %vm408, %v399, 0.0
        %v410 = vsel %vm408, %v401, 0.0
        %v411 = vsel %vm408, %v403, 0.0
        %v412 = vsel %vm408, %v405, 0.0
        %413 = vrot.lane.b32.xlu0 %v332, 125
        %v414 = vpop.permute.xlu0 %413
        %415 = vrot.lane.b32.xlu0 %v333, 125
        %v416 = vpop.permute.xlu0 %415
        %417 = vrot.lane.b32.xlu0 %v334, 125
        %v418 = vpop.permute.xlu0 %417
        %419 = vrot.lane.b32.xlu0 %v335, 125
        %v420 = vpop.permute.xlu0 %419
        %vm421 = vcmp.ge.s32.totalorder %v337, 4294967293
        %vm422 = vcmp.lt.s32.totalorder %v337, 125
        %vm423 = vmand %vm421, %vm422
        %v424 = vsel %vm423, %v414, 0.0
        %v425 = vsel %vm423, %v416, 0.0
        %v426 = vsel %vm423, %v418, 0.0
        %v427 = vsel %vm423, %v420, 0.0
        %v428 = vpack.c.bf16 %v350, %v349
        %v429 = vpack.c.bf16 %v352, %v351
        %v430 = vpack.c.bf16 %v365, %v364
        %v431 = vpack.c.bf16 %v367, %v366
        %v432 = vpack.c.bf16 %v380, %v379
        %v433 = vpack.c.bf16 %v382, %v381
        %v434 = vpack.c.bf16 %v333, %v332
        %v435 = vpack.c.bf16 %v335, %v334
        %v436 = vpack.c.bf16 %v395, %v394
        %v437 = vpack.c.bf16 %v397, %v396
        %v438 = vpack.c.bf16 %v410, %v409
        %v439 = vpack.c.bf16 %v412, %v411
        %v440 = vpack.c.bf16 %v425, %v424
        %v441 = vpack.c.bf16 %v427, %v426
        %v442 = vld [vmem:[%s1] sm:$0xff]
        %v443 = vld [vmem:[%s1 + $0x8] sm:$0xff]
        %v444 = vld [vmem:[%s1 + $0x10] sm:$0xff]
        %v445 = vld [vmem:[%s1 + $0x18] sm:$0xff]
        %v450 = vunpack.c.l.b16 %v442
        %v451 = vunpack.c.h.b16 %v442
        %v452 = vunpack.c.l.b16 %v443
        %v453 = vunpack.c.h.b16 %v443
        %v454 = vunpack.c.l.b16 %v444
        %v455 = vunpack.c.h.b16 %v444
        %v456 = vunpack.c.l.b16 %v445
        %v457 = vunpack.c.h.b16 %v445
        %v458 = vpack.c.b16 %v452, %v450
        %v459 = vpack.c.b16 %v453, %v451
        %v460 = vpack.c.b16 %v456, %v454
        %v461 = vpack.c.b16 %v457, %v455
        %vm464 = vcmask 785408
        %v466 = vsel %vm464, %v459, 0
        %v469 = vsel %vm464, %v461, 0
        %471 = vmatprep.subr.bf16.mxu0 0
        %472 = vmatpush1.bf16.msra.mxu0 %v428
        %473 = vmatprep.subr.bf16.mxu0 0
        %474 = vmatpush1.bf16.msra.mxu0 %v429
        %475 = vmatprep.subr.bf16.mxu0 0
        %476 = vmatpush1.bf16.msra.mxu0 %v430
        %477 = vmatprep.subr.bf16.mxu0 0
        %478 = vmatpush1.bf16.msra.mxu0 %v431
        %479 = vmatprep.subr.bf16.mxu0 0
        %480 = vmatpush1.bf16.msra.mxu0 %v432
        %481 = vmatprep.subr.bf16.mxu0 0
        %482 = vmatpush1.bf16.msra.mxu0 %v433
        %483 = vmatprep.subr.bf16.mxu0 0
        %484 = vmatpush1.bf16.msra.mxu0 %v434
        %485 = vmatprep.subr.bf16.mxu0 0
        %486 = vmatpush1.bf16.msra.mxu0 %v435
        %487 = vmatprep.subr.bf16.mxu0 0
        %488 = vmatpush1.bf16.msra.mxu0 %v436
        %489 = vmatprep.subr.bf16.mxu0 0
        %490 = vmatpush1.bf16.msra.mxu0 %v437
        %491 = vmatprep.subr.bf16.mxu0 0
        %492 = vmatpush1.bf16.msra.mxu0 %v438
        %493 = vmatprep.subr.bf16.mxu0 0
        %494 = vmatpush1.bf16.msra.mxu0 %v439
        %495 = vmatprep.subr.bf16.mxu0 0
        %496 = vmatpush1.bf16.msra.mxu0 %v440
        %497 = vmatprep.subr.bf16.mxu0 0
        %498 = vmatpush1.bf16.msra.mxu0 %v441
        %499 = vmatprep.subr.bf16.mxu0 0
        %500 = vmatpush1.bf16.msra.mxu0 0
        %501 = vmatprep.subr.bf16.mxu0 0
        %502 = vmatpush1.bf16.msra.mxu0 0
        %503 = vmatprep.mubr.bf16.mxu0 %v466
        %504 = vmatmul.mubr.bf16.gmra.mrb[0].mxu0 %v458
        %v505 = vpop.f32.mrb[0].mxu0
        %v506 = vadd.f32 0.0, %v505
        %v507 = vpop.f32.mrb[0].mxu0
        %v508 = vpop.f32.mrb[0].mxu0
        %v509 = vadd.f32 0.0, %v508
        %v510 = vpop.f32.mrb[0].mxu0
        %511 = vmatprep.mubr.bf16.mxu0 %v469
        %512 = vmatmul.mubr.bf16.gmra.mrb[0].mxu0 %v460
        %v513 = vpop.f32.mrb[0].mxu0
        %v514 = vadd.f32 0.0, %v513
        %v515 = vpop.f32.mrb[0].mxu0
        %v516 = vpop.f32.mrb[0].mxu0
        %v517 = vadd.f32 0.0, %v516
        %v518 = vpop.f32.mrb[0].mxu0
        %519 = vdwg.mxu0
        %v520 = vld [vmem:[%s3] sm:$0xff]
        %v521 = vld [vmem:[%s3 + $0x8] sm:$0xff]
        %v522 = vld [vmem:[%s3 + $0x10] sm:$0xff]
        %v523 = vld [vmem:[%s3 + $0x18] sm:$0xff]
        %525 = vset.pattern.permute.xlu0 0
        %526 = vperm.xlu0 %525, %v520
        %v527 = vpop.permute.xlu0 %526
        %530 = vset.pattern.permute.xlu0 0
        %531 = vperm.xlu0 %530, %v521
        %v532 = vpop.permute.xlu0 %531
        %535 = vset.pattern.permute.xlu0 0
        %536 = vperm.xlu0 %535, %v522
        %v537 = vpop.permute.xlu0 %536
        %540 = vset.pattern.permute.xlu0 0
        %541 = vperm.xlu0 %540, %v523
        %v542 = vpop.permute.xlu0 %541
        %v544 = vmul.f32 %v506, %v527
        %v545 = vmul.f32 %v509, %v532
        %v546 = vmul.f32 %v514, %v537
        %v547 = vmul.f32 %v517, %v542
        %548 = vset.pattern.permute.xlu0 1
        %549 = vperm.xlu0 %548, %v520
        %v550 = vpop.permute.xlu0 %549
        %552 = vset.pattern.permute.xlu0 1
        %553 = vperm.xlu0 %552, %v521
        %v554 = vpop.permute.xlu0 %553
        %556 = vset.pattern.permute.xlu0 1
        %557 = vperm.xlu0 %556, %v522
        %v558 = vpop.permute.xlu0 %557
        %560 = vset.pattern.permute.xlu0 1
        %561 = vperm.xlu0 %560, %v523
        %v562 = vpop.permute.xlu0 %561
        %v564 = vadd.f32 %v544, %v550
        %v565 = vadd.f32 %v545, %v554
        %v566 = vadd.f32 %v546, %v558
        %v567 = vadd.f32 %v547, %v562
        %v568 = vmax.f32 %v564, 0.0
        %v569 = vmax.f32 %v565, 0.0
        %v570 = vmax.f32 %v566, 0.0
        %v571 = vmax.f32 %v567, 0.0
        %572 = vrot.lane.b32.xlu0 %v568, 3
        %v573 = vpop.permute.xlu0 %572
        %574 = vrot.lane.b32.xlu0 %v569, 3
        %v575 = vpop.permute.xlu0 %574
        %576 = vrot.lane.b32.xlu0 %v570, 3
        %v577 = vpop.permute.xlu0 %576
        %578 = vrot.lane.b32.xlu0 %v571, 3
        %v579 = vpop.permute.xlu0 %578
        %v580 = vsel %vm348, %v573, 0.0
        %v581 = vsel %vm348, %v575, 0.0
        %v582 = vsel %vm348, %v577, 0.0
        %v583 = vsel %vm348, %v579, 0.0
        %584 = vrot.lane.b32.xlu0 %v568, 2
        %v585 = vpop.permute.xlu0 %584
        %586 = vrot.lane.b32.xlu0 %v569, 2
        %v587 = vpop.permute.xlu0 %586
        %588 = vrot.lane.b32.xlu0 %v570, 2
        %v589 = vpop.permute.xlu0 %588
        %590 = vrot.lane.b32.xlu0 %v571, 2
        %v591 = vpop.permute.xlu0 %590
        %v592 = vsel %vm363, %v585, 0.0
        %v593 = vsel %vm363, %v587, 0.0
        %v594 = vsel %vm363, %v589, 0.0
        %v595 = vsel %vm363, %v591, 0.0
        %596 = vrot.lane.b32.xlu0 %v568, 1
        %v597 = vpop.permute.xlu0 %596
        %598 = vrot.lane.b32.xlu0 %v569, 1
        %v599 = vpop.permute.xlu0 %598
        %600 = vrot.lane.b32.xlu0 %v570, 1
        %v601 = vpop.permute.xlu0 %600
        %602 = vrot.lane.b32.xlu0 %v571, 1
        %v603 = vpop.permute.xlu0 %602
        %v604 = vsel %vm378, %v597, 0.0
        %v605 = vsel %vm378, %v599, 0.0
        %v606 = vsel %vm378, %v601, 0.0
        %v607 = vsel %vm378, %v603, 0.0
        %608 = vrot.lane.b32.xlu0 %v568, 127
        %v609 = vpop.permute.xlu0 %608
        %610 = vrot.lane.b32.xlu0 %v569, 127
        %v611 = vpop.permute.xlu0 %610
        %612 = vrot.lane.b32.xlu0 %v570, 127
        %v613 = vpop.permute.xlu0 %612
        %614 = vrot.lane.b32.xlu0 %v571, 127
        %v615 = vpop.permute.xlu0 %614
        %v616 = vsel %vm393, %v609, 0.0
        %v617 = vsel %vm393, %v611, 0.0
        %v618 = vsel %vm393, %v613, 0.0
        %v619 = vsel %vm393, %v615, 0.0
        %620 = vrot.lane.b32.xlu0 %v568, 126
        %v621 = vpop.permute.xlu0 %620
        %622 = vrot.lane.b32.xlu0 %v569, 126
        %v623 = vpop.permute.xlu0 %622
        %624 = vrot.lane.b32.xlu0 %v570, 126
        %v625 = vpop.permute.xlu0 %624
        %626 = vrot.lane.b32.xlu0 %v571, 126
        %v627 = vpop.permute.xlu0 %626
        %v628 = vsel %vm408, %v621, 0.0
        %v629 = vsel %vm408, %v623, 0.0
        %v630 = vsel %vm408, %v625, 0.0
        %v631 = vsel %vm408, %v627, 0.0
        %632 = vrot.lane.b32.xlu0 %v568, 125
        %v633 = vpop.permute.xlu0 %632
        %634 = vrot.lane.b32.xlu0 %v569, 125
        %v635 = vpop.permute.xlu0 %634
        %636 = vrot.lane.b32.xlu0 %v570, 125
        %v637 = vpop.permute.xlu0 %636
        %638 = vrot.lane.b32.xlu0 %v571, 125
        %v639 = vpop.permute.xlu0 %638
        %v640 = vsel %vm423, %v633, 0.0
        %v641 = vsel %vm423, %v635, 0.0
        %v642 = vsel %vm423, %v637, 0.0
        %v643 = vsel %vm423, %v639, 0.0
        %v644 = vpack.c.bf16 %v581, %v580
        %v645 = vpack.c.bf16 %v583, %v582
        %v646 = vpack.c.bf16 %v593, %v592
        %v647 = vpack.c.bf16 %v595, %v594
        %v648 = vpack.c.bf16 %v605, %v604
        %v649 = vpack.c.bf16 %v607, %v606
        %v650 = vpack.c.bf16 %v569, %v568
        %v651 = vpack.c.bf16 %v571, %v570
        %v652 = vpack.c.bf16 %v617, %v616
        %v653 = vpack.c.bf16 %v619, %v618
        %v654 = vpack.c.bf16 %v629, %v628
        %v655 = vpack.c.bf16 %v631, %v630
        %v656 = vpack.c.bf16 %v641, %v640
        %v657 = vpack.c.bf16 %v643, %v642
        %v658 = vld [vmem:[%s2] sm:$0xff]
        %v659 = vld [vmem:[%s2 + $0x8] sm:$0xff]
        %v660 = vld [vmem:[%s2 + $0x10] sm:$0xff]
        %v661 = vld [vmem:[%s2 + $0x18] sm:$0xff]
        %v666 = vunpack.c.l.b16 %v658
        %v667 = vunpack.c.h.b16 %v658
        %v668 = vunpack.c.l.b16 %v659
        %v669 = vunpack.c.h.b16 %v659
        %v670 = vunpack.c.l.b16 %v660
        %v671 = vunpack.c.h.b16 %v660
        %v672 = vunpack.c.l.b16 %v661
        %v673 = vunpack.c.h.b16 %v661
        %v674 = vpack.c.b16 %v668, %v666
        %v675 = vpack.c.b16 %v669, %v667
        %v676 = vpack.c.b16 %v672, %v670
        %v677 = vpack.c.b16 %v673, %v671
        %v681 = vsel %vm464, %v675, 0
        %v684 = vsel %vm464, %v677, 0
        %686 = vmatprep.subr.bf16.mxu0 0
        %687 = vmatpush1.bf16.msra.mxu0 %v644
        %688 = vmatprep.subr.bf16.mxu0 0
        %689 = vmatpush1.bf16.msra.mxu0 %v645
        %690 = vmatprep.subr.bf16.mxu0 0
        %691 = vmatpush1.bf16.msra.mxu0 %v646
        %692 = vmatprep.subr.bf16.mxu0 0
        %693 = vmatpush1.bf16.msra.mxu0 %v647
        %694 = vmatprep.subr.bf16.mxu0 0
        %695 = vmatpush1.bf16.msra.mxu0 %v648
        %696 = vmatprep.subr.bf16.mxu0 0
        %697 = vmatpush1.bf16.msra.mxu0 %v649
        %698 = vmatprep.subr.bf16.mxu0 0
        %699 = vmatpush1.bf16.msra.mxu0 %v650
        %700 = vmatprep.subr.bf16.mxu0 0
        %701 = vmatpush1.bf16.msra.mxu0 %v651
        %702 = vmatprep.subr.bf16.mxu0 0
        %703 = vmatpush1.bf16.msra.mxu0 %v652
        %704 = vmatprep.subr.bf16.mxu0 0
        %705 = vmatpush1.bf16.msra.mxu0 %v653
        %706 = vmatprep.subr.bf16.mxu0 0
        %707 = vmatpush1.bf16.msra.mxu0 %v654
        %708 = vmatprep.subr.bf16.mxu0 0
        %709 = vmatpush1.bf16.msra.mxu0 %v655
        %710 = vmatprep.subr.bf16.mxu0 0
        %711 = vmatpush1.bf16.msra.mxu0 %v656
        %712 = vmatprep.subr.bf16.mxu0 0
        %713 = vmatpush1.bf16.msra.mxu0 %v657
        %714 = vmatprep.subr.bf16.mxu0 0
        %715 = vmatpush1.bf16.msra.mxu0 0
        %716 = vmatprep.subr.bf16.mxu0 0
        %717 = vmatpush1.bf16.msra.mxu0 0
        %718 = vmatprep.mubr.bf16.mxu0 %v681
        %719 = vmatmul.mubr.bf16.gmra.mrb[0].mxu0 %v674
        %v720 = vpop.f32.mrb[0].mxu0
        %v721 = vadd.f32 0.0, %v720
        %v722 = vpop.f32.mrb[0].mxu0
        %v723 = vpop.f32.mrb[0].mxu0
        %v724 = vadd.f32 0.0, %v723
        %v725 = vpop.f32.mrb[0].mxu0
        %726 = vmatprep.mubr.bf16.mxu0 %v684
        %727 = vmatmul.mubr.bf16.gmra.mrb[0].mxu0 %v676
        %v728 = vpop.f32.mrb[0].mxu0
        %v729 = vadd.f32 0.0, %v728
        %v730 = vpop.f32.mrb[0].mxu0
        %v731 = vpop.f32.mrb[0].mxu0
        %v732 = vadd.f32 0.0, %v731
        %v733 = vpop.f32.mrb[0].mxu0
        %734 = vdwg.mxu0
        %v735 = vld [vmem:[%s4] sm:$0xff]
        %v736 = vld [vmem:[%s4 + $0x8] sm:$0xff]
        %v737 = vld [vmem:[%s4 + $0x10] sm:$0xff]
        %v738 = vld [vmem:[%s4 + $0x18] sm:$0xff]
        %740 = vset.pattern.permute.xlu0 0
        %741 = vperm.xlu0 %740, %v735
        %v742 = vpop.permute.xlu0 %741
        %745 = vset.pattern.permute.xlu0 0
        %746 = vperm.xlu0 %745, %v736
        %v747 = vpop.permute.xlu0 %746
        %750 = vset.pattern.permute.xlu0 0
        %751 = vperm.xlu0 %750, %v737
        %v752 = vpop.permute.xlu0 %751
        %755 = vset.pattern.permute.xlu0 0
        %756 = vperm.xlu0 %755, %v738
        %v757 = vpop.permute.xlu0 %756
        %v759 = vmul.f32 %v721, %v742
        %v760 = vmul.f32 %v724, %v747
        %v761 = vmul.f32 %v729, %v752
        %v762 = vmul.f32 %v732, %v757
        %763 = vset.pattern.permute.xlu0 1
        %764 = vperm.xlu0 %763, %v735
        %v765 = vpop.permute.xlu0 %764
        %767 = vset.pattern.permute.xlu0 1
        %768 = vperm.xlu0 %767, %v736
        %v769 = vpop.permute.xlu0 %768
        %771 = vset.pattern.permute.xlu0 1
        %772 = vperm.xlu0 %771, %v737
        %v773 = vpop.permute.xlu0 %772
        %775 = vset.pattern.permute.xlu0 1
        %776 = vperm.xlu0 %775, %v738
        %v777 = vpop.permute.xlu0 %776
        %v779 = vadd.f32 %v759, %v765
        %v780 = vadd.f32 %v760, %v769
        %v781 = vadd.f32 %v761, %v773
        %v782 = vadd.f32 %v762, %v777
        %783 = vadd.xlane.f32.xlu0 %v779
        %v784 = vpop.xlane.xlu0 %783
        %785 = vadd.xlane.f32.xlu0 %v780
        %v786 = vpop.xlane.xlu0 %785
        %787 = vadd.xlane.f32.xlu0 %v781
        %v788 = vpop.xlane.xlu0 %787
        %789 = vadd.xlane.f32.xlu0 %v782
        %v790 = vpop.xlane.xlu0 %789
        %v791 = vrcp.pop 128.0
        %v792 = vmul.f32 %v784, %v791
        %v793 = vmul.f32 %v786, %v791
        %v794 = vmul.f32 %v788, %v791
        %v795 = vmul.f32 %v790, %v791
        %v796 = vld [vmem:[%s5] sm:$0xff]
        %v797 = vld [vmem:[%s5 + $0x8] sm:$0xff]
        %v798 = vld [vmem:[%s5 + $0x10] sm:$0xff]
        %v799 = vld [vmem:[%s5 + $0x18] sm:$0xff]
        %v800 = vmul.f32 %v796, %v792
        %v801 = vmul.f32 %v797, %v793
        %v802 = vmul.f32 %v798, %v794
        %v803 = vmul.f32 %v799, %v795
        %vm804 = vcmask 15360
        %v805 = vsel %vm804, %v800, 0.0
        %v806 = vsel %vm804, %v801, 0.0
        %v807 = vadd.f32 %v805, %v806
        %v808 = vsel %vm804, %v802, 0.0
        %v809 = vadd.f32 %v807, %v808
        %v810 = vsel %vm804, %v803, 0.0
        %v811 = vadd.f32 %v809, %v810
        %v812 = vrot.slane %v811, 4
        %v813 = vadd.f32 %v811, %v812
        %v814 = vrot.slane %v813, 2
        %v815 = vadd.f32 %v813, %v814
        %v816 = vrot.slane %v815, 1
        %v817 = vadd.f32 %v815, %v816
        %v818 = vld [vmem:[%s6] sm:$0x1]
        %v819 = vadd.f32 %v817, %v818
        %v820 = vmax.f32 %v819, 0.0
        %v821 = vld [vmem:[%s7] sm:$0xff]
        %v822 = vld [vmem:[%s7 + $0x8] sm:$0xff]
        %v823 = vld [vmem:[%s7 + $0x10] sm:$0xff]
        %v824 = vld [vmem:[%s7 + $0x18] sm:$0xff]
        %v825 = vlaneseq
        %v826 = vshrl.u32 %v825, 7
        %v827 = vsub.s32 0, %v826
        %v828 = vrot.slane %v820, %v827
        %v829 = vmul.f32 %v821, %v828
        %v830 = vmul.f32 %v822, %v828
        %v831 = vmul.f32 %v823, %v828
        %v832 = vmul.f32 %v824, %v828
        %v833 = vsel %vm804, %v829, 0.0
        %834 = vadd.xlane.f32.xlu0 %v833
        %v835 = vpop.xlane.xlu0 %834
        %v836 = vsel %vm804, %v830, 0.0
        %837 = vadd.xlane.f32.xlu0 %v836
        %v838 = vpop.xlane.xlu0 %837
        %v839 = vsel %vm804, %v831, 0.0
        %840 = vadd.xlane.f32.xlu0 %v839
        %v841 = vpop.xlane.xlu0 %840
        %v842 = vsel %vm804, %v832, 0.0
        %843 = vadd.xlane.f32.xlu0 %v842
        %v844 = vpop.xlane.xlu0 %843
        %v845 = vld [vmem:[%s8] sm:$0xff]
        %v846 = vld [vmem:[%s8 + $0x8] sm:$0xff]
        %v847 = vld [vmem:[%s8 + $0x10] sm:$0xff]
        %v848 = vld [vmem:[%s8 + $0x18] sm:$0xff]
        %v849 = vadd.f32 %v835, %v845
        %v850 = vadd.f32 %v838, %v846
        %v851 = vadd.f32 %v841, %v847
        %v852 = vadd.f32 %v844, %v848
        %v853 = vxor.u32 %v849, 2147483648
        %v854 = vxor.u32 %v850, 2147483648
        %v855 = vxor.u32 %v851, 2147483648
        %v856 = vxor.u32 %v852, 2147483648
        %v857 = vmul.f32 %v853, 1.442695
        %v858 = vpow.pop %v857
        %v859 = vmul.f32 %v854, 1.442695
        %v860 = vpow.pop %v859
        %v861 = vmul.f32 %v855, 1.442695
        %v862 = vpow.pop %v861
        %v863 = vmul.f32 %v856, 1.442695
        %v864 = vpow.pop %v863
        %v865 = vadd.f32 %v858, 1.0
        %v866 = vadd.f32 %v860, 1.0
        %v867 = vadd.f32 %v862, 1.0
        %v868 = vadd.f32 %v864, 1.0
        %v869 = vrcp.pop %v865
        %v870 = vmul.f32 1.0, %v869
        %v871 = vrcp.pop %v866
        %v872 = vmul.f32 1.0, %v871
        %v873 = vrcp.pop %v867
        %v874 = vmul.f32 1.0, %v873
        %v875 = vrcp.pop %v868
        %v876 = vmul.f32 1.0, %v875
        %878 = vset.pattern.permute.xlu0 0
        %879 = vperm.xlu0 %878, %v870
        %v880 = vpop.permute.xlu0 %879
        %883 = vset.pattern.permute.xlu0 0
        %884 = vperm.xlu0 %883, %v872
        %v885 = vpop.permute.xlu0 %884
        %888 = vset.pattern.permute.xlu0 0
        %889 = vperm.xlu0 %888, %v874
        %v890 = vpop.permute.xlu0 %889
        %893 = vset.pattern.permute.xlu0 0
        %894 = vperm.xlu0 %893, %v876
        %v895 = vpop.permute.xlu0 %894
        %v897 = vmul.f32 %v779, %v880
        %v898 = vmul.f32 %v780, %v885
        %v899 = vmul.f32 %v781, %v890
        %v900 = vmul.f32 %v782, %v895
        %v901 = vadd.f32 %v897, %v332
        %v902 = vadd.f32 %v898, %v333
        %v903 = vadd.f32 %v899, %v334
        %v904 = vadd.f32 %v900, %v335
        %v905 = vmax.f32 %v901, 0.0
        %v906 = vmax.f32 %v902, 0.0
        %v907 = vmax.f32 %v903, 0.0
        %v908 = vmax.f32 %v904, 0.0
        %909 = vst [vmem:[%s325] sm:$0xff] %v905
        %910 = vst [vmem:[%s325 + $0x8] sm:$0xff] %v906
        %911 = vst [vmem:[%s325 + $0x10] sm:$0xff] %v907
        %912 = vst [vmem:[%s325 + $0x18] sm:$0xff] %v908
        %s913 = sand.u32 %s225, 1
        %s914 = scalar_lea.sflag [#allocation3], %s913
        %s915 = sand.u32 %s225, 1
        %s916 = smul.addr %s915, 32
        %s917 = scalar_lea.vmem [#allocation2], %s916
        // Predicated region
        $region57: #{tpu_custom_call.1} parent=55 // pred_check
          %p918 = pneg %p235
        $region58: #{tpu_custom_call.1} parent=55 // pred_check_branch
          %920 = sbr.rel (%p918) target = $region60
        $region59: #{tpu_custom_call.1} parent=55 // pred_region
          %s922 = ssub.s32 512, 512
          %923 = vsyncadd %s914, %s922
          %s924 = smul.addr %s23, 4
          %s925 = smul.addr %s924, 128
          %s926 = scalar_lea.hbm %s9, %s925
          %s927 = sshll.u32 %s917, 4
          %s928 = int_to_ptr.vmem [resolvable:$true] %s927
          %933 = dma.vmem_to_hbm [thread:$0]  %s928, 512, %s926, %s914, 128, 128, 8
        $region60: #{tpu_custom_call.1} parent=55 // pred_fallthru
          _
      $region56: #{tpu_custom_call.1} parent=5 // pred_fallthru
        _
      %p934 = scmp.le.s32.totalorder 2, %s18
      // Predicated region
      $region61: #{tpu_custom_call.1} parent=5 // pred_check
        %p935 = pneg %p934
      $region62: #{tpu_custom_call.1} parent=5 // pred_check_branch
        %937 = sbr.rel (%p935) target = $region64
      $region63: #{tpu_custom_call.1} parent=5 // pred_region
        %s938 = ssub.s32 %s18, 2
        // Predicated region
        $region65: #{tpu_custom_call.1} parent=63 // pred_check
          %p939 = pneg %p241
        $region66: #{tpu_custom_call.1} parent=63 // pred_check_branch
          %941 = sbr.rel (%p939) target = $region68
        $region67: #{tpu_custom_call.1} parent=63 // pred_region
          %s942 = sand.u32 %s226, 1
          %s943 = scalar_lea.sflag [#allocation3], %s942
          %s944 = sand.u32 %s226, 1
          %s945 = smul.addr %s944, 32
          %s946 = scalar_lea.vmem [#allocation2], %s945
          %947 = dma.done %s943, 512
        $region68: #{tpu_custom_call.1} parent=63 // pred_fallthru
          _
      $region64: #{tpu_custom_call.1} parent=5 // pred_fallthru
        _
    $region6: #{tpu_custom_call.1} parent=1 // loop_footer
      %s22 = sadd.s32 1, %s18
    $region7: #{tpu_custom_call.1} parent=1 // loop_footer_branch
      %17 = sbr.rel target = $region3
    $region8: #{tpu_custom_call.1} parent=1 // loop_exit
      _
    %948 = vsyncpa [#allocation3], 1
    %s949 = scalar_lea.sflag [#allocation3], 1
    %950 = vsyncpa %s949, 1

</llo_original>
